<compile_context>
chip_gen: v7x
topology: tpu7x:2x2x1
jax: 0.10.0
libtpu: 0.0.40
codegen_flags: <defaults>
</compile_context>

<pallas_src>
import functools

import numpy as np
import jax
import jax.numpy as jnp
from jax.experimental import pallas as pl
from jax.experimental.pallas import tpu as pltpu


def _rff_kernel(x_ref, w_ref, phase_ref, o_ref, *, inv_sqrt_d, precision):
    # MXU matmul against the lengthscale-folded, column-duplicated projection.
    proj = jnp.dot(
        x_ref[...], w_ref[...],
        preferred_element_type=jnp.float32,
        precision=precision,
    )
    # phase_ref is a (1, tile_d) row [0, -pi/2, 0, -pi/2, ...]:
    #   even cols: cos(p + 0)    = cos(p)
    #   odd  cols: cos(p - pi/2) = sin(p)
    # -> exact interleaved [cos, sin] layout with a single broadcast add.
    o_ref[...] = (jnp.cos(proj + phase_ref[...]) * inv_sqrt_d).astype(o_ref.dtype)


def _round_up(a, b):
    return ((a + b - 1) // b) * b


def prepare_rff_params(w, log_lengthscale):
    """Fold the lengthscale into W, duplicate columns for the interleaved
    [cos, sin] layout, and build the column-parity phase row.

    Call ONCE per parameter set and cache the result (these are static params;
    rebuilding them every forward is pure recurring HBM traffic).

    w:               (d_in, D) float32 Gaussian projection, D = d_features // 2
    log_lengthscale: (d_in,)   float32
    returns:         w2    (d_in, 2D) float32, columns duplicated
                     phase (1, 2D)    float32, [0, -pi/2, 0, -pi/2, ...]
    """
    inv_ls = jnp.exp(-log_lengthscale).astype(jnp.float32)
    w2 = jnp.repeat(w.astype(jnp.float32) * inv_ls[:, None], 2, axis=1)   # (d_in, 2D)
    D = w.shape[1]
    phase = jnp.tile(jnp.array([0.0, -np.pi / 2.0], jnp.float32), D)[None, :]  # (1, 2D)
    return w2, phase


def rff_forward(x, w2, phase, *, tile_n_target=256, vmem_budget_bytes=16 << 20,
                out_dtype=jnp.float32, precision=jax.lax.Precision.DEFAULT):
    """Pallas RFF forward.

    x:     (N, d_in) float32
    w2:    (d_in, 2D) float32   from prepare_rff_params
    phase: (1, 2D)    float32   from prepare_rff_params
    returns: (N, 2D) out_dtype, interleaved [cos_0, sin_0, cos_1, sin_1, ...]
             (out_dtype=jnp.bfloat16 halves the dominant HBM write stream)
    """
    N, d_in = x.shape
    twoD = w2.shape[1]
    D = twoD // 2
    inv_sqrt_d = float(1.0 / np.sqrt(D))
    out_itemsize = jnp.dtype(out_dtype).itemsize

    # ---- Row tiling: pad N only to a multiple of 8 (plus <=8 per row tile),
    # and guarantee >=2 row tiles when N >= 16 so both v7x TCs get work.
    n8 = _round_up(max(N, 1), 8)
    n_row_tiles = max(pl.cdiv(n8, tile_n_target), 2 if n8 >= 16 else 1)
    tile_n = _round_up(pl.cdiv(n8, n_row_tiles), 8)
    n_row_tiles = pl.cdiv(n8, tile_n)
    n_pad = tile_n * n_row_tiles

    # ---- Column tiling from an explicit VMEM budget (double-buffered x, W2,
    # phase row and output).  Keep W2 full-width whenever it fits.
    def vmem_bytes(td):
        return (2 * tile_n * d_in * 4        # x tile (double-buffered)
                + 2 * d_in * td * 4          # W2 slab
                + 2 * td * 4                 # phase row
                + 2 * tile_n * td * out_itemsize)  # output tile

    if vmem_bytes(twoD) <= vmem_budget_bytes:
        tile_d = twoD                         # full-width: W2 never re-fetched
        twoD_pad = twoD
    else:
        td = 128
        while td + 128 < twoD and vmem_bytes(td + 128) <= vmem_budget_bytes:
            td += 128
        tile_d = td
        twoD_pad = _round_up(twoD, tile_d)    # pad columns; no silent fallback

    # ---- Pad operands (no-ops for aligned shapes).
    x = x.astype(jnp.float32)
    if n_pad != N:
        x = jnp.pad(x, ((0, n_pad - N), (0, 0)))
    if twoD_pad != twoD:
        w2 = jnp.pad(w2, ((0, 0), (0, twoD_pad - twoD)))
        phase = jnp.pad(phase, ((0, 0), (0, twoD_pad - twoD)))

    # Rows innermost -> the W2 / phase column slab stays VMEM-resident across
    # all row tiles; only the small x tile is re-fetched.
    grid = (twoD_pad // tile_d, n_pad // tile_n)

    kernel = functools.partial(_rff_kernel, inv_sqrt_d=inv_sqrt_d,
                               precision=precision)

    usage = vmem_bytes(tile_d)
    out = pl.pallas_call(
        kernel,
        out_shape=jax.ShapeDtypeStruct((n_pad, twoD_pad), out_dtype),
        grid_spec=pltpu.PrefetchScalarGridSpec(
            num_scalar_prefetch=0,
            grid=grid,
            in_specs=[
                pl.BlockSpec((tile_n, d_in), lambda j, i: (i, 0)),   # x rows
                pl.BlockSpec((d_in, tile_d), lambda j, i: (0, j)),   # W2 slab
                pl.BlockSpec((1, tile_d), lambda j, i: (0, j)),      # phase row
            ],
            out_specs=pl.BlockSpec((tile_n, tile_d), lambda j, i: (i, j)),
        ),
        compiler_params=pltpu.CompilerParams(
            dimension_semantics=("parallel", "parallel"),
            vmem_limit_bytes=int(min(max(usage + (8 << 20), 16 << 20), 48 << 20)),
        ),
        cost_estimate=pl.CostEstimate(
            flops=2 * n_pad * d_in * twoD_pad,
            transcendentals=n_pad * twoD_pad,
            bytes_accessed=(4 * (n_pad * d_in + d_in * twoD_pad + twoD_pad)
                            + n_pad * twoD_pad * out_itemsize),
        ),
    )(x, w2, phase)

    return out[:N, :twoD]


def rff_reference(x, w, log_lengthscale):
    D = w.shape[1]
    xs = x / jnp.exp(log_lengthscale)[None, :]
    proj = xs @ w
    out = jnp.stack([jnp.cos(proj), jnp.sin(proj)], axis=-1).reshape(x.shape[0], -1)
    return out / np.sqrt(D)


if __name__ == "__main__":
    # Small shapes consistent with the module: d_in=16, d_features=64
    # (complex_weights=False so the projection width is d_features // 2 = 32).
    N, d_in, d_features = 16, 16, 64
    D = d_features // 2

    key = jax.random.PRNGKey(0)
    kx, kw = jax.random.split(key)
    x = jax.random.normal(kx, (N, d_in), dtype=jnp.float32)

    # Deterministic parameter init (mirrors RFF.__init__ / GaussianTransform):
    #   log_lengthscale = log(sqrt(d_in)) * ones(d_in); W ~ N(0, 1) of shape (d_in, D)
    log_lengthscale = jnp.full((d_in,), float(np.log(np.sqrt(d_in))), dtype=jnp.float32)
    w = jax.random.normal(kw, (d_in, D), dtype=jnp.float32)

    # Hoisted, cacheable parameter folding (once per parameter set).
    w2, phase = prepare_rff_params(w, log_lengthscale)
    w2, phase = jax.block_until_ready((w2, phase))

    ref = rff_reference(x, w, log_lengthscale)

    # f32-parity configuration (HIGHEST matmul precision) -> tight check.
    out = rff_forward(x, w2, phase, precision=jax.lax.Precision.HIGHEST)
    out = jax.block_until_ready(out)
    np.testing.assert_allclose(np.asarray(out), np.asarray(ref), rtol=1e-5, atol=1e-5)

    # Benchmark configuration: DEFAULT matmul precision + bf16 output
    # (halved output HBM traffic) -> loose check against the f32 reference.
    out_fast = rff_forward(x, w2, phase, out_dtype=jnp.bfloat16)
    out_fast = jax.block_until_ready(out_fast)
    np.testing.assert_allclose(np.asarray(out_fast).astype(np.float32),
                               np.asarray(ref), rtol=0.0, atol=5e-2)

    print("KERNEL_OK")
</pallas_src>

<mosaic_0001>
module attributes {stable_mosaic.version = 11 : i64} {
  func.func @_rff_kernel(%arg0: i32, %arg1: i32, %arg2: memref<8x16xf32, #tpu.memory_space<vmem>>, %arg3: memref<16x64xf32, #tpu.memory_space<vmem>>, %arg4: memref<1x64xf32, #tpu.memory_space<vmem>>, %arg5: memref<8x64xf32, #tpu.memory_space<vmem>>) attributes {dimension_semantics = [#tpu.dimension_semantics<parallel>, #tpu.dimension_semantics<parallel>], iteration_bounds = array<i64: 1, 2>, scalar_prefetch = 0 : i64, scratch_operands = 0 : i64, tpu.core_type = #tpu.core_type<tc>, window_params = [{transform_indices = @transform_0, window_bounds = array<i64: 8, 16>}, {transform_indices = @transform_1, window_bounds = array<i64: 16, 64>}, {transform_indices = @transform_2, window_bounds = array<i64: 1, 64>}, {transform_indices = @transform_3, window_bounds = array<i64: 8, 64>}]} {
    %c0 = arith.constant 0 : index
    %c0_0 = arith.constant 0 : index
    %0 = vector.load %arg2[%c0, %c0_0] : memref<8x16xf32, #tpu.memory_space<vmem>>, vector<8x16xf32>
    %c0_1 = arith.constant 0 : index
    %c0_2 = arith.constant 0 : index
    %1 = vector.load %arg3[%c0_1, %c0_2] : memref<16x64xf32, #tpu.memory_space<vmem>>, vector<16x64xf32>
    %cst = arith.constant dense<0.000000e+00> : vector<8x64xf32>
    %2 = tpu.matmul %0, %1, %cst {dimension_numbers = #tpu.dot_dimension_numbers<[1], [0], [0], [1], [0, 0, 1, 1], [], []>, precision = #tpu.contract_precision<fp32>} : vector<8x16xf32>, vector<16x64xf32>, vector<8x64xf32> -> vector<8x64xf32>
    %c0_3 = arith.constant 0 : index
    %c0_4 = arith.constant 0 : index
    %3 = vector.load %arg4[%c0_3, %c0_4] : memref<1x64xf32, #tpu.memory_space<vmem>>, vector<1x64xf32>
    %4 = vector.broadcast %3 : vector<1x64xf32> to vector<8x64xf32>
    %5 = arith.addf %2, %4 : vector<8x64xf32>
    %6 = math.cos %5 : vector<8x64xf32>
    %cst_5 = arith.constant 0.176776692 : f32
    %7 = vector.broadcast %cst_5 : f32 to vector<8x64xf32>
    %8 = arith.mulf %6, %7 : vector<8x64xf32>
    %c0_6 = arith.constant 0 : index
    %c0_7 = arith.constant 0 : index
    %9 = vector.load %arg5[%c0_6, %c0_7] : memref<8x64xf32, #tpu.memory_space<vmem>>, vector<8x64xf32>
    tpu.vector_store %arg5[%c0_6, %c0_7], %8 {strides = array<i32>} : memref<8x64xf32, #tpu.memory_space<vmem>>, vector<8x64xf32>,
    return
  }
  func.func @transform_0(%arg0: i32, %arg1: i32) -> (i32, i32) {
    %c0_i32 = arith.constant 0 : i32
    %c0_i32_0 = arith.constant 0 : i32
    return %arg1, %c0_i32 : i32, i32
  }
  func.func @transform_1(%arg0: i32, %arg1: i32) -> (i32, i32) {
    %c0_i32 = arith.constant 0 : i32
    %c0_i32_0 = arith.constant 0 : i32
    return %c0_i32, %arg0 : i32, i32
  }
  func.func @transform_2(%arg0: i32, %arg1: i32) -> (i32, i32) {
    %c0_i32 = arith.constant 0 : i32
    %c0_i32_0 = arith.constant 0 : i32
    return %c0_i32, %arg0 : i32, i32
  }
  func.func @transform_3(%arg0: i32, %arg1: i32) -> (i32, i32) {
    %c0_i32 = arith.constant 0 : i32
    return %arg1, %arg0 : i32, i32
  }
}

</mosaic_0001>

<llo_original>
// kernel: tpu_custom_call.1
$region0: #{tpu_custom_call.1}
  #allocation0 [shape = 'u32[]', space=smem, size = 0x4, offset = 0x4, fixed_abs, tag = 'smem constant byte address 0x4 - core index']
  #allocation1 [shape = 'u32[144,128]{1,0:T(1,128)}', space=vmem, size = 0x12000, scoped, tag = 'internal scratch']
  %s0 = inlined_call_operand.hbm [shape: f32[16,16], index: 0, kind: input, shape index: {}]
  %s1 = inlined_call_operand.hbm [shape: f32[16,64], index: 1, kind: input, shape index: {}]
  %s2 = inlined_call_operand.vmem [shape: f32[1,64], index: 2, kind: input, shape index: {}]
  %s3 = inlined_call_operand.hbm [shape: f32[16,64], index: 3, kind: output, shape index: {}]
  %s4 = sld [smem:[#allocation0]]
  $region53: #{tpu_custom_call.1} parent=0
    _
  %s6 = ssub.s32 1, %s4
  %s7 = scalar_select 0, %s6, %s4
  $region1: #{tpu_custom_call.1} parent=0
    #allocation2 [shape = 'u8[8192]{0}', space=vmem, size = 0x2000, scoped, tag = 'input window, operand 0']
    #allocation3 [shape = 's32[2]{0}', space=sflag, size = 0x8, scoped, tag = 'scoped memory for tpu_custom_call.1']
    #allocation4 [shape = 's32[2]{0}', space=sflag, size = 0x8, scoped, tag = 'scoped memory for tpu_custom_call.1']
    #allocation5 [shape = 'u8[8192]{0}', space=vmem, size = 0x2000, scoped, tag = 'input window, operand 1, single buffered']
    #allocation6 [shape = 's32[1]{0}', space=sflag, size = 0x4, scoped, tag = 'scoped memory for tpu_custom_call.1']
    #allocation7 [shape = 'u8[8192]{0}', space=vmem, size = 0x2000, scoped, tag = 'output window, operand 0']
    %8 = vsyncpa [#allocation3], 0
    %s9 = scalar_lea.sflag [#allocation3], 1
    %10 = vsyncpa %s9, 0
    %11 = vsyncpa [#allocation6], 0
    %12 = vsyncpa [#allocation4], 0
    %s13 = scalar_lea.sflag [#allocation4], 1
    %14 = vsyncpa %s13, 0
    loop: start=0, step=1, limit=4
    $region2: #{tpu_custom_call.1} parent=1 // loop_pre_header
      _
    $region3: #{tpu_custom_call.1} parent=1 // loop_header
      %s16 = sphi 0, %s20
      %p17 = scmp.ge.s32.totalorder %s16, 4
      %s23 = sphi 0, %s35
      %s24 = sphi 0, %s31
      %s25 = sphi 0, %s23
      %s26 = sphi 0, %s24
      %s27 = sphi 0, %s25
      %s28 = sphi 0, %s26
      %s38 = sphi 0, %s40
      %s41 = sphi 0, %s38
      %s42 = sphi 0, %s41
      %s58 = sphi 0, %s42
      %s64 = sphi 0, %s66
      %s67 = sphi 0, %s64
      %s68 = sphi 0, %s67
      %s84 = sphi 0, %s68
      %s90 = sphi 0, %s92
      %s93 = sphi 0, %s90
      %s94 = sphi 0, %s93
      %s110 = sphi 0, %s94
      %s118 = sphi 0, %s120
      %s121 = sphi 0, %s118
      %s122 = sphi 0, %s121
      %s138 = sphi 0, %s122
    $region4: #{tpu_custom_call.1} parent=1 // loop_header_branch
      %19 = sbr.rel (%p17) target = $region8
    $region5: #{tpu_custom_call.1} parent=1 // loop_body
      %s21 = ssub.s32 %s16, 1
      %s22 = ssub.s32 %s16, 2
      %s29 = sadd.s32 1, %s24
      %p30 = scmp.ge.s32.totalorder %s29, 2
      %s31 = scalar_select %p30, 0, %s29
      %s32 = sadd.s32 1, %s23
      %s33 = scalar_select %p30, %s32, %s23
      %p34 = scmp.ge.s32.totalorder %s33, 1
      %s35 = scalar_select %p34, 0, %s33
      %s36 = ssub.s32 %s24, %s31
      %p37 = scmp.eq.s32.totalorder %s36, 0
      %s39 = sadd.s32 %s38, 1
      %s40 = scalar_select %p37, %s38, %s39
      %p43 = pneg %p37
      %p44 = scmp.eq.s32.totalorder %s16, 1
      %p45 = por %p43, %p44
      %p46 = scmp.ne.s32.totalorder %s38, %s41
      %p47 = scmp.eq.s32.totalorder %s16, 0
      %p48 = por %p46, %p47
      %p49 = scmp.ne.s32.totalorder %s38, %s41
      %p50 = scmp.eq.s32.totalorder %s21, 1
      %p51 = por %p49, %p50
      %p52 = scmp.ne.s32.totalorder %s41, %s42
      %p53 = scmp.eq.s32.totalorder %s21, 0
      %p54 = por %p52, %p53
      %p55 = scmp.ne.s32.totalorder %s41, %s42
      %p56 = scmp.eq.s32.totalorder %s22, 1
      %p57 = por %p55, %p56
      %p59 = scmp.ne.s32.totalorder %s42, %s58
      %p60 = scmp.eq.s32.totalorder %s22, 0
      %p61 = por %p59, %p60
      %s62 = ssub.s32 %s23, %s35
      %p63 = scmp.eq.s32.totalorder %s62, 0
      %s65 = sadd.s32 %s64, 1
      %s66 = scalar_select %p63, %s64, %s65
      %p69 = pneg %p63
      %p70 = scmp.eq.s32.totalorder %s16, 1
      %p71 = por %p69, %p70
      %p72 = scmp.ne.s32.totalorder %s64, %s67
      %p73 = scmp.eq.s32.totalorder %s16, 0
      %p74 = por %p72, %p73
      %p75 = scmp.ne.s32.totalorder %s64, %s67
      %p76 = scmp.eq.s32.totalorder %s21, 1
      %p77 = por %p75, %p76
      %p78 = scmp.ne.s32.totalorder %s67, %s68
      %p79 = scmp.eq.s32.totalorder %s21, 0
      %p80 = por %p78, %p79
      %p81 = scmp.ne.s32.totalorder %s67, %s68
      %p82 = scmp.eq.s32.totalorder %s22, 1
      %p83 = por %p81, %p82
      %p85 = scmp.ne.s32.totalorder %s68, %s84
      %p86 = scmp.eq.s32.totalorder %s22, 0
      %p87 = por %p85, %p86
      %s88 = ssub.s32 %s23, %s35
      %p89 = scmp.eq.s32.totalorder %s88, 0
      %s91 = sadd.s32 %s90, 1
      %s92 = scalar_select %p89, %s90, %s91
      %p95 = pneg %p89
      %p96 = scmp.eq.s32.totalorder %s16, 1
      %p97 = por %p95, %p96
      %p98 = scmp.ne.s32.totalorder %s90, %s93
      %p99 = scmp.eq.s32.totalorder %s16, 0
      %p100 = por %p98, %p99
      %p101 = scmp.ne.s32.totalorder %s90, %s93
      %p102 = scmp.eq.s32.totalorder %s21, 1
      %p103 = por %p101, %p102
      %p104 = scmp.ne.s32.totalorder %s93, %s94
      %p105 = scmp.eq.s32.totalorder %s21, 0
      %p106 = por %p104, %p105
      %p107 = scmp.ne.s32.totalorder %s93, %s94
      %p108 = scmp.eq.s32.totalorder %s22, 1
      %p109 = por %p107, %p108
      %p111 = scmp.ne.s32.totalorder %s94, %s110
      %p112 = scmp.eq.s32.totalorder %s22, 0
      %p113 = por %p111, %p112
      %s114 = ssub.s32 %s24, %s31
      %s115 = ssub.s32 %s23, %s35
      %s116 = sor.u32 %s114, %s115
      %p117 = scmp.eq.s32.totalorder %s116, 0
      %s119 = sadd.s32 %s118, 1
      %s120 = scalar_select %p117, %s118, %s119
      %p123 = pneg %p117
      %p124 = scmp.eq.s32.totalorder %s16, 1
      %p125 = por %p123, %p124
      %p126 = scmp.ne.s32.totalorder %s118, %s121
      %p127 = scmp.eq.s32.totalorder %s16, 0
      %p128 = por %p126, %p127
      %p129 = scmp.ne.s32.totalorder %s118, %s121
      %p130 = scmp.eq.s32.totalorder %s21, 1
      %p131 = por %p129, %p130
      %p132 = scmp.ne.s32.totalorder %s121, %s122
      %p133 = scmp.eq.s32.totalorder %s21, 0
      %p134 = por %p132, %p133
      %p135 = scmp.ne.s32.totalorder %s121, %s122
      %p136 = scmp.eq.s32.totalorder %s22, 1
      %p137 = por %p135, %p136
      %p139 = scmp.ne.s32.totalorder %s122, %s138
      %p140 = scmp.eq.s32.totalorder %s22, 0
      %p141 = por %p139, %p140
      %p142 = scmp.le.s32.totalorder 1, %s16
      %p143 = scmp.lt.s32.totalorder %s16, 3
      %p144 = pnand %p142, %p143
      %p145 = pneg %p144
      // Predicated region
      $region9: #{tpu_custom_call.1} parent=5 // pred_check
        _
      $region10: #{tpu_custom_call.1} parent=5 // pred_check_branch
        %147 = sbr.rel (%p144) target = $region12
      $region11: #{tpu_custom_call.1} parent=5 // pred_region
        %s148 = ssub.s32 %s16, 1
        // Predicated region
        $region13: #{tpu_custom_call.1} parent=11 // pred_check
          %p149 = pneg %p80
        $region14: #{tpu_custom_call.1} parent=11 // pred_check_branch
          %151 = sbr.rel (%p149) target = $region16
        $region15: #{tpu_custom_call.1} parent=11 // pred_region
          %s153 = ssub.s32 256, 256
          %154 = vsyncadd [#allocation6], %s153
          %s155 = smul.addr %s25, 128
          %s156 = scalar_lea.hbm %s1, %s155
          %s157 = sshll.u32 [#allocation5], 4
          %s158 = int_to_ptr.vmem [resolvable:$true] %s157
          %163 = dma.hbm_to_vmem [thread:$0]  %s156, 256, %s158, [#allocation6], 128, 128, 8
        $region16: #{tpu_custom_call.1} parent=11 // pred_fallthru
          _
        // Predicated region
        $region17: #{tpu_custom_call.1} parent=11 // pred_check
          %p164 = pneg %p106
        $region18: #{tpu_custom_call.1} parent=11 // pred_check_branch
          %166 = sbr.rel (%p164) target = $region20
        $region19: #{tpu_custom_call.1} parent=11 // pred_region
          %p167 = scmp.lt.s32.totalorder %s25, 0
          %s168 = scalar_select %p167, %s25, 0
          %s169 = scalar_lea.vmem %s2, %s168
        $region20: #{tpu_custom_call.1} parent=11 // pred_fallthru
          _
      $region12: #{tpu_custom_call.1} parent=5 // pred_fallthru
        _
      %p170 = scmp.lt.s32.totalorder %s16, 2
      // Predicated region
      $region21: #{tpu_custom_call.1} parent=5 // pred_check
        %p171 = pneg %p170
      $region22: #{tpu_custom_call.1} parent=5 // pred_check_branch
        %173 = sbr.rel (%p171) target = $region24
      $region23: #{tpu_custom_call.1} parent=5 // pred_region
        // Predicated region
        $region25: #{tpu_custom_call.1} parent=23 // pred_check
          %p174 = pneg %p48
        $region26: #{tpu_custom_call.1} parent=23 // pred_check_branch
          %176 = sbr.rel (%p174) target = $region28
        $region27: #{tpu_custom_call.1} parent=23 // pred_region
          %s177 = sand.u32 %s38, 1
          %s178 = scalar_lea.sflag [#allocation3], %s177
          %s179 = sand.u32 %s38, 1
          %s180 = smul.addr %s179, 8
          %s181 = scalar_lea.vmem [#allocation2], %s180
          %s183 = ssub.s32 128, 128
          %184 = vsyncadd %s178, %s183
          %s185 = smul.addr %s24, 128
          %s186 = scalar_lea.hbm %s0, %s185
          %s188 = sshll.u32 %s181, 4
          %s189 = int_to_ptr.vmem [resolvable:$true] %s188
          %191 = dma.hbm_to_vmem [thread:$0]  %s186, 128, %s189, %s178
        $region28: #{tpu_custom_call.1} parent=23 // pred_fallthru
          _
      $region24: #{tpu_custom_call.1} parent=5 // pred_fallthru
        _
      %p192 = scmp.le.s32.totalorder 1, %s16
      %p193 = scmp.lt.s32.totalorder %s16, 3
      %p194 = pnand %p192, %p193
      %p195 = pneg %p194
      // Predicated region
      $region29: #{tpu_custom_call.1} parent=5 // pred_check
        _
      $region30: #{tpu_custom_call.1} parent=5 // pred_check_branch
        %197 = sbr.rel (%p194) target = $region32
      $region31: #{tpu_custom_call.1} parent=5 // pred_region
        %s198 = ssub.s32 %s16, 1
        %s199 = sand.u32 %s41, 1
        %s200 = scalar_lea.sflag [#allocation3], %s199
        %s201 = sand.u32 %s41, 1
        %s202 = smul.addr %s201, 8
        %s203 = scalar_lea.vmem [#allocation2], %s202
        // Predicated region
        $region33: #{tpu_custom_call.1} parent=31 // pred_check
          %p204 = pneg %p54
        $region34: #{tpu_custom_call.1} parent=31 // pred_check_branch
          %206 = sbr.rel (%p204) target = $region36
        $region35: #{tpu_custom_call.1} parent=31 // pred_region
          %207 = dma.done %s200, 128
        $region36: #{tpu_custom_call.1} parent=31 // pred_fallthru
          _
        // Predicated region
        $region37: #{tpu_custom_call.1} parent=31 // pred_check
          %p208 = pneg %p80
        $region38: #{tpu_custom_call.1} parent=31 // pred_check_branch
          %210 = sbr.rel (%p208) target = $region40
        $region39: #{tpu_custom_call.1} parent=31 // pred_region
          %211 = dma.done [#allocation6], 256
        $region40: #{tpu_custom_call.1} parent=31 // pred_fallthru
          _
        %s212 = sand.u32 %s41, 1
        %s213 = scalar_lea.sflag [#allocation3], %s212
        %s214 = sand.u32 %s41, 1
        %s215 = smul.addr %s214, 8
        %s216 = scalar_lea.vmem [#allocation2], %s215
        %p217 = pneg %p54
        %p218 = pneg %p51
        %p219 = pneg %p80
        %p220 = pneg %p77
        %p221 = scmp.lt.s32.totalorder %s25, 0
        %s222 = scalar_select %p221, %s25, 0
        %s223 = scalar_lea.vmem %s2, %s222
        %p224 = pneg %p106
        %p225 = pneg %p103
        %p226 = pneg %p134
        %p227 = pneg %p131
        %s228 = sand.u32 %s121, 1
        %s229 = scalar_lea.sflag [#allocation4], %s228
        %s230 = sand.u32 %s121, 1
        %s231 = smul.addr %s230, 8
        %s232 = scalar_lea.vmem [#allocation7], %s231
        %p233 = scmp.lt.s32.totalorder %s25, 0
        %s234 = scalar_select %p233, %s25, 0
        %s235 = scalar_lea.vmem %s2, %s234
        %v236 = vld [vmem:[%s203] sm:$0xff]
        %v237 = vld [vmem:[#allocation5] sm:$0xff]
        %v238 = vld [vmem:[#allocation5 + $0x8] sm:$0xff]
        %v239 = vld [vmem:[%s235] sm:$0x1]
        %v241 = vlaneseq
        %v242 = vshrl.u32 %v241, 7
        %v243 = vsub.s32 0, %v242
        %v244 = vrot.slane %v239, %v243
        %vm246 = vcmask 130048
        %v248 = vsel %vm246, %v236, 0
        %250 = vmatprep.subr.mxu0 0.0
        %v251 = vand.u32 %v237, 4294901760
        %252 = vmatpush1.msra.mxu0 %v251
        %253 = vmatprep.subr.mxu0 0.0
        %v254 = vand.u32 %v238, 4294901760
        %255 = vmatpush1.msra.mxu0 %v254
        %256 = vmatprep.subr.mxu0 0.0
        %257 = vmatpush1.msra.mxu0 0.0
        %258 = vmatprep.subr.mxu0 0.0
        %259 = vmatpush1.msra.mxu0 0.0
        %260 = vmatprep.subr.mxu0 0.0
        %261 = vmatpush1.msra.mxu0 0.0
        %262 = vmatprep.subr.mxu0 0.0
        %263 = vmatpush1.msra.mxu0 0.0
        %264 = vmatprep.subr.mxu0 0.0
        %265 = vmatpush1.msra.mxu0 0.0
        %266 = vmatprep.subr.mxu0 0.0
        %267 = vmatpush1.msra.mxu0 0.0
        %268 = vmatprep.subr.mxu0 0.0
        %269 = vmatpush1.msra.mxu0 0.0
        %270 = vmatprep.subr.mxu0 0.0
        %271 = vmatpush1.msra.mxu0 0.0
        %272 = vmatprep.subr.mxu0 0.0
        %273 = vmatpush1.msra.mxu0 0.0
        %274 = vmatprep.subr.mxu0 0.0
        %275 = vmatpush1.msra.mxu0 0.0
        %276 = vmatprep.subr.mxu0 0.0
        %277 = vmatpush1.msra.mxu0 0.0
        %278 = vmatprep.subr.mxu0 0.0
        %279 = vmatpush1.msra.mxu0 0.0
        %280 = vmatprep.subr.mxu0 0.0
        %281 = vmatpush1.msra.mxu0 0.0
        %282 = vmatprep.subr.mxu0 0.0
        %283 = vmatpush1.msra.mxu0 0.0
        %284 = vmatprep.subr.mxu0 0.0
        %285 = vmatpush1.msra.mxu0 0.0
        %286 = vmatprep.subr.mxu0 0.0
        %287 = vmatpush1.msra.mxu0 0.0
        %288 = vmatprep.subr.mxu0 0.0
        %289 = vmatpush1.msra.mxu0 0.0
        %290 = vmatprep.subr.mxu0 0.0
        %291 = vmatpush1.msra.mxu0 0.0
        %292 = vmatprep.subr.mxu0 0.0
        %293 = vmatpush1.msra.mxu0 0.0
        %294 = vmatprep.subr.mxu0 0.0
        %295 = vmatpush1.msra.mxu0 0.0
        %296 = vmatprep.subr.mxu0 0.0
        %297 = vmatpush1.msra.mxu0 0.0
        %298 = vmatprep.subr.mxu0 0.0
        %299 = vmatpush1.msra.mxu0 0.0
        %300 = vmatprep.subr.mxu0 0.0
        %301 = vmatpush1.msra.mxu0 0.0
        %302 = vmatprep.subr.mxu0 0.0
        %303 = vmatpush1.msra.mxu0 0.0
        %304 = vmatprep.subr.mxu0 0.0
        %305 = vmatpush1.msra.mxu0 0.0
        %306 = vmatprep.subr.mxu0 0.0
        %307 = vmatpush1.msra.mxu0 0.0
        %308 = vmatprep.subr.mxu0 0.0
        %309 = vmatpush1.msra.mxu0 0.0
        %310 = vmatprep.subr.mxu0 0.0
        %311 = vmatpush1.msra.mxu0 0.0
        %312 = vmatprep.subr.mxu0 0.0
        %313 = vmatpush1.msra.mxu0 0.0
        %314 = vmatprep.subr.mxu0 0.0
        %315 = vmatpush1.msra.mxu0 0.0
        %316 = vmatprep.mubr.f32.mxu0 0.0
        %v317 = vand.u32 %v248, 4294901760
        %v318 = vsub.f32 %v248, %v317
        %v319 = vand.u32 %v318, 4294901760
        %v320 = vsub.f32 %v318, %v319
        %v321 = vand.u32 %v320, 4294901760
        %322 = vmatmul.mubr.f32.gmra.mrb[0].mxu0 %v321
        %v323 = vpop.f32.mrb[0].mxu0
        %v324 = vadd.f32 %v244, %v323
        %v325 = vpop.f32.mrb[0].mxu0
        %326 = vdwg.mxu0
        %327 = vmatprep.subr.mxu0 0.0
        %v328 = vand.u32 %v237, 4294901760
        %v329 = vsub.f32 %v237, %v328
        %v330 = vand.u32 %v329, 4294901760
        %v331 = vsub.f32 %v329, %v330
        %v332 = vand.u32 %v331, 4294901760
        %333 = vmatpush1.msra.mxu0 %v332
        %334 = vmatprep.subr.mxu0 0.0
        %v335 = vand.u32 %v238, 4294901760
        %v336 = vsub.f32 %v238, %v335
        %v337 = vand.u32 %v336, 4294901760
        %v338 = vsub.f32 %v336, %v337
        %v339 = vand.u32 %v338, 4294901760
        %340 = vmatpush1.msra.mxu0 %v339
        %341 = vmatprep.subr.mxu0 0.0
        %342 = vmatpush1.msra.mxu0 0.0
        %343 = vmatprep.subr.mxu0 0.0
        %344 = vmatpush1.msra.mxu0 0.0
        %345 = vmatprep.subr.mxu0 0.0
        %346 = vmatpush1.msra.mxu0 0.0
        %347 = vmatprep.subr.mxu0 0.0
        %348 = vmatpush1.msra.mxu0 0.0
        %349 = vmatprep.subr.mxu0 0.0
        %350 = vmatpush1.msra.mxu0 0.0
        %351 = vmatprep.subr.mxu0 0.0
        %352 = vmatpush1.msra.mxu0 0.0
        %353 = vmatprep.subr.mxu0 0.0
        %354 = vmatpush1.msra.mxu0 0.0
        %355 = vmatprep.subr.mxu0 0.0
        %356 = vmatpush1.msra.mxu0 0.0
        %357 = vmatprep.subr.mxu0 0.0
        %358 = vmatpush1.msra.mxu0 0.0
        %359 = vmatprep.subr.mxu0 0.0
        %360 = vmatpush1.msra.mxu0 0.0
        %361 = vmatprep.subr.mxu0 0.0
        %362 = vmatpush1.msra.mxu0 0.0
        %363 = vmatprep.subr.mxu0 0.0
        %364 = vmatpush1.msra.mxu0 0.0
        %365 = vmatprep.subr.mxu0 0.0
        %366 = vmatpush1.msra.mxu0 0.0
        %367 = vmatprep.subr.mxu0 0.0
        %368 = vmatpush1.msra.mxu0 0.0
        %369 = vmatprep.subr.mxu0 0.0
        %370 = vmatpush1.msra.mxu0 0.0
        %371 = vmatprep.subr.mxu0 0.0
        %372 = vmatpush1.msra.mxu0 0.0
        %373 = vmatprep.subr.mxu0 0.0
        %374 = vmatpush1.msra.mxu0 0.0
        %375 = vmatprep.subr.mxu0 0.0
        %376 = vmatpush1.msra.mxu0 0.0
        %377 = vmatprep.subr.mxu0 0.0
        %378 = vmatpush1.msra.mxu0 0.0
        %379 = vmatprep.subr.mxu0 0.0
        %380 = vmatpush1.msra.mxu0 0.0
        %381 = vmatprep.subr.mxu0 0.0
        %382 = vmatpush1.msra.mxu0 0.0
        %383 = vmatprep.subr.mxu0 0.0
        %384 = vmatpush1.msra.mxu0 0.0
        %385 = vmatprep.subr.mxu0 0.0
        %386 = vmatpush1.msra.mxu0 0.0
        %387 = vmatprep.subr.mxu0 0.0
        %388 = vmatpush1.msra.mxu0 0.0
        %389 = vmatprep.subr.mxu0 0.0
        %390 = vmatpush1.msra.mxu0 0.0
        %391 = vmatprep.subr.mxu0 0.0
        %392 = vmatpush1.msra.mxu0 0.0
        %393 = vmatprep.subr.mxu0 0.0
        %394 = vmatpush1.msra.mxu0 0.0
        %395 = vmatprep.subr.mxu0 0.0
        %396 = vmatpush1.msra.mxu0 0.0
        %397 = vmatprep.subr.mxu0 0.0
        %398 = vmatpush1.msra.mxu0 0.0
        %399 = vmatprep.subr.mxu0 0.0
        %400 = vmatpush1.msra.mxu0 0.0
        %401 = vmatprep.mubr.f32.mxu0 0.0
        %v402 = vand.u32 %v248, 4294901760
        %403 = vmatmul.mubr.f32.gmra.mrb[0].mxu0 %v402
        %v404 = vpop.f32.mrb[0].mxu0
        %v405 = vadd.f32 %v324, %v404
        %v406 = vpop.f32.mrb[0].mxu0
        %407 = vdwg.mxu0
        %408 = vmatprep.subr.mxu0 0.0
        %v409 = vand.u32 %v237, 4294901760
        %v410 = vsub.f32 %v237, %v409
        %411 = vmatpush1.msra.mxu0 %v410
        %412 = vmatprep.subr.mxu0 0.0
        %v413 = vand.u32 %v238, 4294901760
        %v414 = vsub.f32 %v238, %v413
        %415 = vmatpush1.msra.mxu0 %v414
        %416 = vmatprep.subr.mxu0 0.0
        %417 = vmatpush1.msra.mxu0 0.0
        %418 = vmatprep.subr.mxu0 0.0
        %419 = vmatpush1.msra.mxu0 0.0
        %420 = vmatprep.subr.mxu0 0.0
        %421 = vmatpush1.msra.mxu0 0.0
        %422 = vmatprep.subr.mxu0 0.0
        %423 = vmatpush1.msra.mxu0 0.0
        %424 = vmatprep.subr.mxu0 0.0
        %425 = vmatpush1.msra.mxu0 0.0
        %426 = vmatprep.subr.mxu0 0.0
        %427 = vmatpush1.msra.mxu0 0.0
        %428 = vmatprep.subr.mxu0 0.0
        %429 = vmatpush1.msra.mxu0 0.0
        %430 = vmatprep.subr.mxu0 0.0
        %431 = vmatpush1.msra.mxu0 0.0
        %432 = vmatprep.subr.mxu0 0.0
        %433 = vmatpush1.msra.mxu0 0.0
        %434 = vmatprep.subr.mxu0 0.0
        %435 = vmatpush1.msra.mxu0 0.0
        %436 = vmatprep.subr.mxu0 0.0
        %437 = vmatpush1.msra.mxu0 0.0
        %438 = vmatprep.subr.mxu0 0.0
        %439 = vmatpush1.msra.mxu0 0.0
        %440 = vmatprep.subr.mxu0 0.0
        %441 = vmatpush1.msra.mxu0 0.0
        %442 = vmatprep.subr.mxu0 0.0
        %443 = vmatpush1.msra.mxu0 0.0
        %444 = vmatprep.subr.mxu0 0.0
        %445 = vmatpush1.msra.mxu0 0.0
        %446 = vmatprep.subr.mxu0 0.0
        %447 = vmatpush1.msra.mxu0 0.0
        %448 = vmatprep.subr.mxu0 0.0
        %449 = vmatpush1.msra.mxu0 0.0
        %450 = vmatprep.subr.mxu0 0.0
        %451 = vmatpush1.msra.mxu0 0.0
        %452 = vmatprep.subr.mxu0 0.0
        %453 = vmatpush1.msra.mxu0 0.0
        %454 = vmatprep.subr.mxu0 0.0
        %455 = vmatpush1.msra.mxu0 0.0
        %456 = vmatprep.subr.mxu0 0.0
        %457 = vmatpush1.msra.mxu0 0.0
        %458 = vmatprep.subr.mxu0 0.0
        %459 = vmatpush1.msra.mxu0 0.0
        %460 = vmatprep.subr.mxu0 0.0
        %461 = vmatpush1.msra.mxu0 0.0
        %462 = vmatprep.subr.mxu0 0.0
        %463 = vmatpush1.msra.mxu0 0.0
        %464 = vmatprep.subr.mxu0 0.0
        %465 = vmatpush1.msra.mxu0 0.0
        %466 = vmatprep.subr.mxu0 0.0
        %467 = vmatpush1.msra.mxu0 0.0
        %468 = vmatprep.subr.mxu0 0.0
        %469 = vmatpush1.msra.mxu0 0.0
        %470 = vmatprep.subr.mxu0 0.0
        %471 = vmatpush1.msra.mxu0 0.0
        %472 = vmatprep.subr.mxu0 0.0
        %473 = vmatpush1.msra.mxu0 0.0
        %474 = vmatprep.subr.mxu0 0.0
        %475 = vmatpush1.msra.mxu0 0.0
        %476 = vmatprep.mubr.f32.mxu0 0.0
        %v477 = vand.u32 %v248, 4294901760
        %v478 = vsub.f32 %v248, %v477
        %479 = vmatmul.mubr.f32.gmra.mrb[0].mxu0 %v478
        %v480 = vpop.f32.mrb[0].mxu0
        %v481 = vadd.f32 %v405, %v480
        %v482 = vpop.f32.mrb[0].mxu0
        %483 = vdwg.mxu0
        %484 = vmatprep.subr.mxu0 0.0
        %v485 = vand.u32 %v237, 4294901760
        %486 = vmatpush1.msra.mxu0 %v485
        %487 = vmatprep.subr.mxu0 0.0
        %v488 = vand.u32 %v238, 4294901760
        %489 = vmatpush1.msra.mxu0 %v488
        %490 = vmatprep.subr.mxu0 0.0
        %491 = vmatpush1.msra.mxu0 0.0
        %492 = vmatprep.subr.mxu0 0.0
        %493 = vmatpush1.msra.mxu0 0.0
        %494 = vmatprep.subr.mxu0 0.0
        %495 = vmatpush1.msra.mxu0 0.0
        %496 = vmatprep.subr.mxu0 0.0
        %497 = vmatpush1.msra.mxu0 0.0
        %498 = vmatprep.subr.mxu0 0.0
        %499 = vmatpush1.msra.mxu0 0.0
        %500 = vmatprep.subr.mxu0 0.0
        %501 = vmatpush1.msra.mxu0 0.0
        %502 = vmatprep.subr.mxu0 0.0
        %503 = vmatpush1.msra.mxu0 0.0
        %504 = vmatprep.subr.mxu0 0.0
        %505 = vmatpush1.msra.mxu0 0.0
        %506 = vmatprep.subr.mxu0 0.0
        %507 = vmatpush1.msra.mxu0 0.0
        %508 = vmatprep.subr.mxu0 0.0
        %509 = vmatpush1.msra.mxu0 0.0
        %510 = vmatprep.subr.mxu0 0.0
        %511 = vmatpush1.msra.mxu0 0.0
        %512 = vmatprep.subr.mxu0 0.0
        %513 = vmatpush1.msra.mxu0 0.0
        %514 = vmatprep.subr.mxu0 0.0
        %515 = vmatpush1.msra.mxu0 0.0
        %516 = vmatprep.subr.mxu0 0.0
        %517 = vmatpush1.msra.mxu0 0.0
        %518 = vmatprep.subr.mxu0 0.0
        %519 = vmatpush1.msra.mxu0 0.0
        %520 = vmatprep.subr.mxu0 0.0
        %521 = vmatpush1.msra.mxu0 0.0
        %522 = vmatprep.subr.mxu0 0.0
        %523 = vmatpush1.msra.mxu0 0.0
        %524 = vmatprep.subr.mxu0 0.0
        %525 = vmatpush1.msra.mxu0 0.0
        %526 = vmatprep.subr.mxu0 0.0
        %527 = vmatpush1.msra.mxu0 0.0
        %528 = vmatprep.subr.mxu0 0.0
        %529 = vmatpush1.msra.mxu0 0.0
        %530 = vmatprep.subr.mxu0 0.0
        %531 = vmatpush1.msra.mxu0 0.0
        %532 = vmatprep.subr.mxu0 0.0
        %533 = vmatpush1.msra.mxu0 0.0
        %534 = vmatprep.subr.mxu0 0.0
        %535 = vmatpush1.msra.mxu0 0.0
        %536 = vmatprep.subr.mxu0 0.0
        %537 = vmatpush1.msra.mxu0 0.0
        %538 = vmatprep.subr.mxu0 0.0
        %539 = vmatpush1.msra.mxu0 0.0
        %540 = vmatprep.subr.mxu0 0.0
        %541 = vmatpush1.msra.mxu0 0.0
        %542 = vmatprep.subr.mxu0 0.0
        %543 = vmatpush1.msra.mxu0 0.0
        %544 = vmatprep.subr.mxu0 0.0
        %545 = vmatpush1.msra.mxu0 0.0
        %546 = vmatprep.subr.mxu0 0.0
        %547 = vmatpush1.msra.mxu0 0.0
        %548 = vmatprep.subr.mxu0 0.0
        %549 = vmatpush1.msra.mxu0 0.0
        %550 = vmatprep.mubr.f32.mxu0 0.0
        %v551 = vand.u32 %v248, 4294901760
        %v552 = vsub.f32 %v248, %v551
        %v553 = vand.u32 %v552, 4294901760
        %554 = vmatmul.mubr.f32.gmra.mrb[0].mxu0 %v553
        %v555 = vpop.f32.mrb[0].mxu0
        %v556 = vadd.f32 %v481, %v555
        %v557 = vpop.f32.mrb[0].mxu0
        %558 = vdwg.mxu0
        %559 = vmatprep.subr.mxu0 0.0
        %v560 = vand.u32 %v237, 4294901760
        %v561 = vsub.f32 %v237, %v560
        %v562 = vand.u32 %v561, 4294901760
        %563 = vmatpush1.msra.mxu0 %v562
        %564 = vmatprep.subr.mxu0 0.0
        %v565 = vand.u32 %v238, 4294901760
        %v566 = vsub.f32 %v238, %v565
        %v567 = vand.u32 %v566, 4294901760
        %568 = vmatpush1.msra.mxu0 %v567
        %569 = vmatprep.subr.mxu0 0.0
        %570 = vmatpush1.msra.mxu0 0.0
        %571 = vmatprep.subr.mxu0 0.0
        %572 = vmatpush1.msra.mxu0 0.0
        %573 = vmatprep.subr.mxu0 0.0
        %574 = vmatpush1.msra.mxu0 0.0
        %575 = vmatprep.subr.mxu0 0.0
        %576 = vmatpush1.msra.mxu0 0.0
        %577 = vmatprep.subr.mxu0 0.0
        %578 = vmatpush1.msra.mxu0 0.0
        %579 = vmatprep.subr.mxu0 0.0
        %580 = vmatpush1.msra.mxu0 0.0
        %581 = vmatprep.subr.mxu0 0.0
        %582 = vmatpush1.msra.mxu0 0.0
        %583 = vmatprep.subr.mxu0 0.0
        %584 = vmatpush1.msra.mxu0 0.0
        %585 = vmatprep.subr.mxu0 0.0
        %586 = vmatpush1.msra.mxu0 0.0
        %587 = vmatprep.subr.mxu0 0.0
        %588 = vmatpush1.msra.mxu0 0.0
        %589 = vmatprep.subr.mxu0 0.0
        %590 = vmatpush1.msra.mxu0 0.0
        %591 = vmatprep.subr.mxu0 0.0
        %592 = vmatpush1.msra.mxu0 0.0
        %593 = vmatprep.subr.mxu0 0.0
        %594 = vmatpush1.msra.mxu0 0.0
        %595 = vmatprep.subr.mxu0 0.0
        %596 = vmatpush1.msra.mxu0 0.0
        %597 = vmatprep.subr.mxu0 0.0
        %598 = vmatpush1.msra.mxu0 0.0
        %599 = vmatprep.subr.mxu0 0.0
        %600 = vmatpush1.msra.mxu0 0.0
        %601 = vmatprep.subr.mxu0 0.0
        %602 = vmatpush1.msra.mxu0 0.0
        %603 = vmatprep.subr.mxu0 0.0
        %604 = vmatpush1.msra.mxu0 0.0
        %605 = vmatprep.subr.mxu0 0.0
        %606 = vmatpush1.msra.mxu0 0.0
        %607 = vmatprep.subr.mxu0 0.0
        %608 = vmatpush1.msra.mxu0 0.0
        %609 = vmatprep.subr.mxu0 0.0
        %610 = vmatpush1.msra.mxu0 0.0
        %611 = vmatprep.subr.mxu0 0.0
        %612 = vmatpush1.msra.mxu0 0.0
        %613 = vmatprep.subr.mxu0 0.0
        %614 = vmatpush1.msra.mxu0 0.0
        %615 = vmatprep.subr.mxu0 0.0
        %616 = vmatpush1.msra.mxu0 0.0
        %617 = vmatprep.subr.mxu0 0.0
        %618 = vmatpush1.msra.mxu0 0.0
        %619 = vmatprep.subr.mxu0 0.0
        %620 = vmatpush1.msra.mxu0 0.0
        %621 = vmatprep.subr.mxu0 0.0
        %622 = vmatpush1.msra.mxu0 0.0
        %623 = vmatprep.subr.mxu0 0.0
        %624 = vmatpush1.msra.mxu0 0.0
        %625 = vmatprep.subr.mxu0 0.0
        %626 = vmatpush1.msra.mxu0 0.0
        %627 = vmatprep.subr.mxu0 0.0
        %628 = vmatpush1.msra.mxu0 0.0
        %629 = vmatprep.mubr.f32.mxu0 0.0
        %v630 = vand.u32 %v248, 4294901760
        %631 = vmatmul.mubr.f32.gmra.mrb[0].mxu0 %v630
        %v632 = vpop.f32.mrb[0].mxu0
        %v633 = vadd.f32 %v556, %v632
        %v634 = vpop.f32.mrb[0].mxu0
        %635 = vdwg.mxu0
        %636 = vmatprep.subr.mxu0 0.0
        %v637 = vand.u32 %v237, 4294901760
        %638 = vmatpush1.msra.mxu0 %v637
        %639 = vmatprep.subr.mxu0 0.0
        %v640 = vand.u32 %v238, 4294901760
        %641 = vmatpush1.msra.mxu0 %v640
        %642 = vmatprep.subr.mxu0 0.0
        %643 = vmatpush1.msra.mxu0 0.0
        %644 = vmatprep.subr.mxu0 0.0
        %645 = vmatpush1.msra.mxu0 0.0
        %646 = vmatprep.subr.mxu0 0.0
        %647 = vmatpush1.msra.mxu0 0.0
        %648 = vmatprep.subr.mxu0 0.0
        %649 = vmatpush1.msra.mxu0 0.0
        %650 = vmatprep.subr.mxu0 0.0
        %651 = vmatpush1.msra.mxu0 0.0
        %652 = vmatprep.subr.mxu0 0.0
        %653 = vmatpush1.msra.mxu0 0.0
        %654 = vmatprep.subr.mxu0 0.0
        %655 = vmatpush1.msra.mxu0 0.0
        %656 = vmatprep.subr.mxu0 0.0
        %657 = vmatpush1.msra.mxu0 0.0
        %658 = vmatprep.subr.mxu0 0.0
        %659 = vmatpush1.msra.mxu0 0.0
        %660 = vmatprep.subr.mxu0 0.0
        %661 = vmatpush1.msra.mxu0 0.0
        %662 = vmatprep.subr.mxu0 0.0
        %663 = vmatpush1.msra.mxu0 0.0
        %664 = vmatprep.subr.mxu0 0.0
        %665 = vmatpush1.msra.mxu0 0.0
        %666 = vmatprep.subr.mxu0 0.0
        %667 = vmatpush1.msra.mxu0 0.0
        %668 = vmatprep.subr.mxu0 0.0
        %669 = vmatpush1.msra.mxu0 0.0
        %670 = vmatprep.subr.mxu0 0.0
        %671 = vmatpush1.msra.mxu0 0.0
        %672 = vmatprep.subr.mxu0 0.0
        %673 = vmatpush1.msra.mxu0 0.0
        %674 = vmatprep.subr.mxu0 0.0
        %675 = vmatpush1.msra.mxu0 0.0
        %676 = vmatprep.subr.mxu0 0.0
        %677 = vmatpush1.msra.mxu0 0.0
        %678 = vmatprep.subr.mxu0 0.0
        %679 = vmatpush1.msra.mxu0 0.0
        %680 = vmatprep.subr.mxu0 0.0
        %681 = vmatpush1.msra.mxu0 0.0
        %682 = vmatprep.subr.mxu0 0.0
        %683 = vmatpush1.msra.mxu0 0.0
        %684 = vmatprep.subr.mxu0 0.0
        %685 = vmatpush1.msra.mxu0 0.0
        %686 = vmatprep.subr.mxu0 0.0
        %687 = vmatpush1.msra.mxu0 0.0
        %688 = vmatprep.subr.mxu0 0.0
        %689 = vmatpush1.msra.mxu0 0.0
        %690 = vmatprep.subr.mxu0 0.0
        %691 = vmatpush1.msra.mxu0 0.0
        %692 = vmatprep.subr.mxu0 0.0
        %693 = vmatpush1.msra.mxu0 0.0
        %694 = vmatprep.subr.mxu0 0.0
        %695 = vmatpush1.msra.mxu0 0.0
        %696 = vmatprep.subr.mxu0 0.0
        %697 = vmatpush1.msra.mxu0 0.0
        %698 = vmatprep.subr.mxu0 0.0
        %699 = vmatpush1.msra.mxu0 0.0
        %700 = vmatprep.subr.mxu0 0.0
        %701 = vmatpush1.msra.mxu0 0.0
        %702 = vmatprep.mubr.f32.mxu0 0.0
        %v703 = vand.u32 %v248, 4294901760
        %704 = vmatmul.mubr.f32.gmra.mrb[0].mxu0 %v703
        %v705 = vpop.f32.mrb[0].mxu0
        %v706 = vadd.f32 %v633, %v705
        %v707 = vpop.f32.mrb[0].mxu0
        %708 = vdwg.mxu0
        %v709 = vand.u32 2147483647, %v706
        %vm710 = vcmp.le.f32.partialorder %v709, 0.7853982
        %vm711 = vcmp.lt.s32.totalorder %v706, 0
        %v712 = vand.u32 %v706, 2139095040
        %v713 = vshrl.u32 %v712, 23
        %v714 = vsub.s32 %v713, 127
        %v715 = vand.u32 2147483647, %v706
        %v716 = vand.u32 %v715, 8388607
        %v717 = vor.u32 %v716, 8388608
        %v718 = vsub.s32 0, %v717
        %v719 = vadd.s32 %v714, 1
        %vm720 = vcmp.gt.s32.totalorder %v719, 0
        %v721 = vsel %vm720, %v719, 0
        %v722 = vshrl.u32 %v721, 5
        %v723 = vand.u32 %v721, 31
        %v724 = vsub.s32 32, %v723
        %v725 = vshrl.u32 683565275, %v724
        %v726 = vshll.u32 683565275, %v723
        %v727 = vshrl.u32 2475754826, %v724
        %v728 = vor.u32 %v726, %v727
        %v729 = vshll.u32 2475754826, %v723
        %v730 = vshrl.u32 2131351028, %v724
        %v731 = vor.u32 %v729, %v730
        %v732 = vshll.u32 2131351028, %v723
        %v733 = vshrl.u32 2102212464, %v724
        %v734 = vor.u32 %v732, %v733
        %v735 = vshll.u32 2102212464, %v723
        %v736 = vshrl.u32 920167782, %v724
        %v737 = vor.u32 %v735, %v736
        %v738 = vshll.u32 920167782, %v723
        %v739 = vshrl.u32 1326507024, %v724
        %v740 = vor.u32 %v738, %v739
        %vm741 = vcmp.lt.s32.totalorder %v722, 1
        %vm742 = vcmp.lt.s32.totalorder %v722, 2
        %vm743 = vcmp.lt.s32.totalorder %v722, 3
        %vm744 = vcmp.lt.s32.totalorder %v722, 4
        %v745 = vsel %vm741, %v725, %v728
        %v746 = vsel %vm744, %v734, 2102212464
        %v747 = vsel %vm743, %v731, %v746
        %v748 = vsel %vm742, %v745, %v747
        %v749 = vsel %vm741, %v728, %v731
        %v750 = vsel %vm744, %v737, 920167782
        %v751 = vsel %vm743, %v734, %v750
        %v752 = vsel %vm742, %v749, %v751
        %v753 = vsel %vm741, %v731, %v734
        %v754 = vsel %vm744, %v740, 1326507024
        %v755 = vsel %vm743, %v737, %v754
        %v756 = vsel %vm742, %v753, %v755
        %v757 = vshll.u32 %v717, 8
        %v758 = vmul.u32.u64.compose %v757, %v756
        %v759 = vextract.low.u32 %v758
        %v760 = vextract.high.u32 %v758
        %v761 = vmul.u32.u64.compose %v757, %v752
        %v762 = vextract.low.u32 %v761
        %v763 = vextract.high.u32 %v761
        %v764 = vmul.u32 %v757, %v748
        %v765 = vadd.s32 %v760, %v762
        %vm766 = vc.u32 %v760, %v762
        %v767 = vadd.s32 %v763, 1
        %v768 = vsel %vm766, %v767, %v763
        %v769 = vadd.s32 %v764, %v768
        %v770 = vadd.s32 %v769, 536870912
        %v771 = vshrl.u32 %v770, 30
        %v772 = vshll.u32 %v771, 30
        %v773 = vsub.s32 %v769, %v772
        %vm774 = vcmp.lt.s32.totalorder %v773, 0
        %v775 = vsub.s32 0, %v773
        %v776 = vsel %vm774, %v775, %v773
        %v777 = vclz %v776
        %v778 = vsub.s32 %v777, 2
        %vm779 = vcmp.gt.s32.totalorder 0, %v778
        %v780 = vsel %vm779, 0, %v778
        %v781 = vsub.s32 32, %v780
        %v782 = vshll.u32 %v773, %v780
        %v783 = vshrl.u32 %v765, %v781
        %v784 = vor.u32 %v782, %v783
        %v785 = vsub.s32 4294967266, %v780
        %v786 = vadd.s32 %v785, 127
        %v787 = vshll.u32 %v786, 23
        %v788 = vor.u32 4788187, %v787
        %v789 = vand.u32 2147483647, %v788
        %v791 = vcvt.s32.f32 %v784
        %v792 = vmul.f32 %v791, %v789
        %v793 = vxor.u32 %v792, 2147483648
        %v794 = vsel %vm711, %v793, %v792
        %v795 = vsub.s32 4, %v771
        %v796 = vsel %vm711, %v795, %v771
        %v797 = vsel %vm710, %v706, %v794
        %v798 = vsel %vm710, 0, %v796
        %v799 = vcosq.f32.pop %v797
        %v800 = vsinq.f32.pop %v797
        %vm801 = vweird.f32 %v706
        %v802 = vand.u32 %v798, 3
        %vm803 = vcmp.lt.s32.totalorder %v802, 2
        %vm804 = vcmp.eq.s32.totalorder %v802, 0
        %v805 = vxor.u32 %v800, 2147483648
        %v806 = vsel %vm804, %v799, %v805
        %vm807 = vcmp.eq.s32.totalorder %v802, 2
        %v808 = vxor.u32 %v799, 2147483648
        %v809 = vsel %vm807, %v808, %v800
        %v810 = vsel %vm803, %v806, %v809
        %v811 = vsel %vm801, nan, %v810
        %v812 = vmul.f32 %v811, 0.17677669
        %vm813 = vcmask 523264
        %814 = vst.msk [vmem:[%s232] sm:$0xff] %vm813, %v812
        %s815 = sand.u32 %s121, 1
        %s816 = scalar_lea.sflag [#allocation4], %s815
        %s817 = sand.u32 %s121, 1
        %s818 = smul.addr %s817, 8
        %s819 = scalar_lea.vmem [#allocation7], %s818
        // Predicated region
        $region41: #{tpu_custom_call.1} parent=31 // pred_check
          %p820 = pneg %p131
        $region42: #{tpu_custom_call.1} parent=31 // pred_check_branch
          %822 = sbr.rel (%p820) target = $region44
        $region43: #{tpu_custom_call.1} parent=31 // pred_region
          %s824 = ssub.s32 128, 128
          %825 = vsyncadd %s816, %s824
          %s826 = sadd.s32 %s25, %s26
          %s827 = smul.addr %s826, 128
          %s828 = scalar_lea.hbm %s3, %s827
          %s830 = sshll.u32 %s819, 4
          %s831 = int_to_ptr.vmem [resolvable:$true] %s830
          %833 = dma.vmem_to_hbm [thread:$0]  %s831, 128, %s828, %s816
        $region44: #{tpu_custom_call.1} parent=31 // pred_fallthru
          _
      $region32: #{tpu_custom_call.1} parent=5 // pred_fallthru
        _
      %p834 = scmp.le.s32.totalorder 2, %s16
      // Predicated region
      $region45: #{tpu_custom_call.1} parent=5 // pred_check
        %p835 = pneg %p834
      $region46: #{tpu_custom_call.1} parent=5 // pred_check_branch
        %837 = sbr.rel (%p835) target = $region48
      $region47: #{tpu_custom_call.1} parent=5 // pred_region
        %s838 = ssub.s32 %s16, 2
        // Predicated region
        $region49: #{tpu_custom_call.1} parent=47 // pred_check
          %p839 = pneg %p137
        $region50: #{tpu_custom_call.1} parent=47 // pred_check_branch
          %841 = sbr.rel (%p839) target = $region52
        $region51: #{tpu_custom_call.1} parent=47 // pred_region
          %s842 = sand.u32 %s122, 1
          %s843 = scalar_lea.sflag [#allocation4], %s842
          %s844 = sand.u32 %s122, 1
          %s845 = smul.addr %s844, 8
          %s846 = scalar_lea.vmem [#allocation7], %s845
          %847 = dma.done %s843, 128
        $region52: #{tpu_custom_call.1} parent=47 // pred_fallthru
          _
      $region48: #{tpu_custom_call.1} parent=5 // pred_fallthru
        _
    $region6: #{tpu_custom_call.1} parent=1 // loop_footer
      %s20 = sadd.s32 1, %s16
    $region7: #{tpu_custom_call.1} parent=1 // loop_footer_branch
      %15 = sbr.rel target = $region3
    $region8: #{tpu_custom_call.1} parent=1 // loop_exit
      _
    %848 = vsyncpa [#allocation3], 1
    %s849 = scalar_lea.sflag [#allocation3], 1
    %850 = vsyncpa %s849, 1
    %851 = vsyncpa [#allocation6], 1
    %852 = vsyncpa [#allocation4], 1
    %s853 = scalar_lea.sflag [#allocation4], 1
    %854 = vsyncpa %s853, 1

</llo_original>
